<compile_context>
chip_gen: v7x
topology: tpu7x:2x2x1
jax: 0.10.0
libtpu: 0.0.40
codegen_flags: <defaults>
</compile_context>

<pallas_src>
import functools

import jax
import jax.numpy as jnp
from jax.experimental import pallas as pl
from jax.experimental.pallas import tpu as pltpu


def _listmle_kernel(pred_ref, out_ref, *, valid_len, batch, block_rows):
    """One batch block.

    pred_ref: (TB, LP) block of y_pred already permuted into y_true's descending order
              (caller dtype, f32/bf16).  Lanes >= valid_len hold -1e30 padding.
    out_ref : (1, LP) f32 lane-dense per-block partial sums of the per-element loss.
    """
    p = pred_ref[...].astype(jnp.float32)                    # (TB, LP) upcast in-kernel
    tb, lp = p.shape

    lane = jax.lax.broadcasted_iota(jnp.int32, (1, lp), 1)   # (1, LP) int32 lane ids

    # Per-row max shift before exp (allRank-style numerical stabilisation).  Padding is
    # -1e30 so it never wins the max; e is additionally masked so a degenerate row whose
    # valid logits are all ~-1e30 cannot be contaminated by padding lanes.
    m = jnp.max(p, axis=-1, keepdims=True)                   # (TB, 1)
    e = jnp.exp(p - m)                                       # (TB, LP)
    if valid_len != lp:
        e = jnp.where(lane < valid_len, e, 0.0)

    # Reverse (suffix) inclusive cumsum along lanes via a log2(LP) Hillis-Steele
    # shift-and-add scan: XLU lane rotates + VPU adds with trace-time-constant masks.
    # pltpu.roll uses the jnp.roll convention, so roll(s, LP - d)[i] == s[(i + d) % LP];
    # masking lanes >= LP - d kills the circular wrap-around.
    # TODO(synk): for LP > 128, a per-128-lane-chunk scan plus a chunk-carry pass would
    # keep every rotate inside a single vreg; full-width rolls are used for simplicity.
    s = e
    d = 1
    while d < lp:                                            # unrolled at trace time
        nbr = pltpu.roll(s, shift=lp - d, axis=1)
        s = s + jnp.where(lane < lp - d, nbr, 0.0)
        d *= 2

    # loss = log(cumsum + eps) - logits on the max-shifted logits (the +m/-m of the
    # unshifted formulation cancel exactly; only the eps placement differs, see header).
    elem = jnp.log(s + 1e-10) - (p - m)

    keep = None
    if valid_len != lp:
        keep = lane < valid_len                              # (1, LP) lane-validity
    if batch % block_rows != 0:
        row = jax.lax.broadcasted_iota(jnp.int32, (tb, 1), 0)
        row_ok = (pl.program_id(0) * block_rows + row) < batch   # (TB, 1) remainder mask
        keep = row_ok if keep is None else jnp.logical_and(keep, row_ok)
    if keep is not None:
        elem = jnp.where(keep, elem, 0.0)

    # Lane-dense per-block partial sums (one sublane reduce).  The tiny reduction over
    # blocks and the divide-by-B happen in the wrapper, so the batch grid axis carries
    # no accumulator and can be scheduled "parallel" across TensorCores.
    out_ref[...] = jnp.sum(elem, axis=0, keepdims=True)


def _round_down(x, m):
    return max(m, (x // m) * m)


def _pick_block_rows(batch, lp, itemsize):
    """Rows per grid step.

    Multiple of the dtype's sublane packing (f32: 8, bf16: 16), VMEM-budgeted so live
    f32 temporaries + the double-buffered input block stay well under v7x's 64 MiB, and
    capped so the "parallel" batch axis spans >= 2 (ideally >= 4) grid steps whenever
    the batch is large enough (v7x has two TensorCores; also keeps the DMA/compute
    pipeline busy on v5e/v6e).
    """
    min_rows = max(8, 8 * (4 // itemsize))       # f32 -> 8, bf16/f16 -> 16, int8 -> 32
    if batch <= min_rows:
        return batch                             # one block; block dim == full array dim
    budget = 24 * 1024 * 1024                    # conservative for v7x (64 MiB VMEM)
    tb = 512
    while tb > min_rows and tb * lp * (2 * itemsize + 10 * 4) > budget:
        tb //= 2
    tb = min(tb, _round_down(batch, min_rows))   # block never wider than the array
    if batch >= 4 * min_rows:
        tb = min(tb, _round_down(batch // 4, min_rows))   # >= 4 grid steps
    elif batch >= 2 * min_rows:
        tb = min(tb, _round_down(batch // 2, min_rows))   # >= 2 grid steps
    return max(tb, min_rows)


def listmle_loss(y_pred, y_true, k=None):
    """ListMLE loss.  y_pred, y_true: (B, L) float arrays.  Returns a scalar f32."""
    if k is not None:
        # TODO(synk): the optional torch.rand-based k-sublist sampling path is not implemented.
        raise NotImplementedError("k-sublist sampling (k is not None) is not supported")
    assert y_pred.ndim == 2 and y_pred.shape == y_true.shape
    B, L = y_pred.shape

    # Glue: fused stable descending sort of y_true + gather of y_pred in one
    # lax.sort_key_val (replaces argsort + take_along_axis).  NOTE: for large L this
    # sort, not the kernel, dominates end-to-end wall-clock.
    _, pred_sorted = jax.lax.sort_key_val(-y_true, y_pred, dimension=-1)

    # Pad the list axis up to a lane multiple (128).  Pad logits are -1e30 -> exp == 0,
    # so they do not perturb the suffix sums; their loss terms are masked in-kernel.
    # TODO(synk): for tiny L (<= ~32) a sublane-major (transposed) layout would avoid up
    # to 16x wasted lanes of DMA + exp/log work.
    lp = ((L + 127) // 128) * 128
    if lp != L:
        pred_sorted = jnp.pad(pred_sorted, ((0, 0), (0, lp - L)), constant_values=-1e30)

    itemsize = jnp.dtype(pred_sorted.dtype).itemsize
    tb = _pick_block_rows(B, lp, itemsize)
    num_blocks = pl.cdiv(B, tb)
    n_steps = max(1, (lp - 1).bit_length())      # log2(LP) scan steps

    partials = pl.pallas_call(
        functools.partial(_listmle_kernel, valid_len=L, batch=B, block_rows=tb),
        out_shape=jax.ShapeDtypeStruct((num_blocks, 1, lp), jnp.float32),
        grid=(num_blocks,),
        in_specs=[pl.BlockSpec((tb, lp), lambda i: (i, 0))],
        out_specs=pl.BlockSpec((None, 1, lp), lambda i: (i, 0, 0)),
        compiler_params=pltpu.CompilerParams(
            dimension_semantics=("parallel",),
            vmem_limit_bytes=48 * 1024 * 1024,
        ),
        cost_estimate=pl.CostEstimate(
            flops=int(B * lp * (3 * n_steps + 8)),
            transcendentals=int(2 * B * lp),
            bytes_accessed=int(B * lp * itemsize + num_blocks * lp * 4),
        ),
    )(pred_sorted)

    return jnp.sum(partials) / jnp.float32(B)


def _listmle_ref(y_pred, y_true):
    """Pure-JAX reference mirroring the PyTorch module exactly (no max-shift)."""
    indices = jnp.argsort(-y_true, axis=-1)
    p = jnp.take_along_axis(y_pred, indices, axis=-1).astype(jnp.float32)
    cumsums = jnp.flip(jnp.cumsum(jnp.flip(jnp.exp(p), axis=1), axis=1), axis=1)
    loss = jnp.log(cumsums + 1e-10) - p
    return jnp.mean(jnp.sum(loss, axis=1))


if __name__ == "__main__":
    key = jax.random.PRNGKey(0)
    k1, k2, k3, k4, k5, k6 = jax.random.split(key, 6)

    # Case 1: small f32 problem (single batch block), shapes from the module's forward.
    y_pred = jax.random.normal(k1, (4, 8), dtype=jnp.float32)
    y_true = jax.random.normal(k2, (4, 8), dtype=jnp.float32)
    out = jax.block_until_ready(listmle_loss(y_pred, y_true))
    ref = jax.block_until_ready(_listmle_ref(y_pred, y_true))
    assert jnp.allclose(out, ref, rtol=1e-5, atol=1e-5), (out, ref)

    # Case 2: multi-block grid over the batch (24 rows -> 3 blocks of 8), f32.
    y_pred2 = jax.random.normal(k3, (24, 8), dtype=jnp.float32)
    y_true2 = jax.random.normal(k4, (24, 8), dtype=jnp.float32)
    out2 = jax.block_until_ready(listmle_loss(y_pred2, y_true2))
    ref2 = jax.block_until_ready(_listmle_ref(y_pred2, y_true2))
    assert jnp.allclose(out2, ref2, rtol=1e-5, atol=1e-5), (out2, ref2)

    # Case 3: bf16 inputs flow through the glue un-cast (half the DMA bytes); the
    # kernel upcasts to f32 internally.
    y_pred3 = jax.random.normal(k5, (16, 12), dtype=jnp.bfloat16)
    y_true3 = jax.random.normal(k6, (16, 12), dtype=jnp.bfloat16)
    out3 = jax.block_until_ready(listmle_loss(y_pred3, y_true3))
    ref3 = jax.block_until_ready(_listmle_ref(y_pred3, y_true3))
    assert jnp.allclose(out3, ref3, rtol=1e-5, atol=1e-5), (out3, ref3)

    print("KERNEL_OK")
</pallas_src>

<mosaic_0001>
module attributes {stable_mosaic.version = 11 : i64} {
  func.func @_listmle_kernel(%arg0: i32, %arg1: memref<4x128xf32, #tpu.memory_space<vmem>>, %arg2: memref<1x1x128xf32, #tpu.memory_space<vmem>>) attributes {dimension_semantics = [#tpu.dimension_semantics<parallel>], iteration_bounds = array<i64: 1>, scalar_prefetch = 0 : i64, scratch_operands = 0 : i64, tpu.core_type = #tpu.core_type<tc>, window_params = [{transform_indices = @transform_0, window_bounds = array<i64: 4, 128>}, {transform_indices = @transform_1, window_bounds = array<i64: 1, 1, 128>}]} {
    %c0 = arith.constant 0 : index
    %c0_0 = arith.constant 0 : index
    %0 = vector.load %arg1[%c0, %c0_0] : memref<4x128xf32, #tpu.memory_space<vmem>>, vector<4x128xf32>
    %1 = tpu.iota {dimensions = array<i32: 1>} : vector<1x128xi32>
    %cst = arith.constant dense<0xFF800000> : vector<4xf32>
    %2 = vector.multi_reduction <maximumf>, %0, %cst [1] : vector<4x128xf32> to vector<4xf32>
    %3 = vector.shape_cast %2 : vector<4xf32> to vector<4x1xf32>
    %4 = vector.broadcast %3 : vector<4x1xf32> to vector<4x128xf32>
    %5 = arith.subf %0, %4 : vector<4x128xf32>
    %6 = math.exp %5 : vector<4x128xf32>
    %c8_i32 = arith.constant 8 : i32
    %7 = vector.broadcast %c8_i32 : i32 to vector<1x128xi32>
    %8 = arith.cmpi slt, %1, %7 : vector<1x128xi32>
    %cst_1 = arith.constant 0.000000e+00 : f32
    %9 = vector.shape_cast %8 : vector<1x128xi1> to vector<1x128xi1>
    %10 = vector.broadcast %9 : vector<1x128xi1> to vector<4x128xi1>
    %11 = vector.broadcast %cst_1 : f32 to vector<4x128xf32>
    %12 = arith.select %10, %6, %11 : vector<4x128xi1>, vector<4x128xf32>
    %c127_i32 = arith.constant 127 : i32
    %13 = tpu.dynamic_rotate %12 by %c127_i32 dim 1 : vector<4x128xf32>, i32 -> vector<4x128xf32>
    %c127_i32_2 = arith.constant 127 : i32
    %14 = vector.broadcast %c127_i32_2 : i32 to vector<1x128xi32>
    %15 = arith.cmpi slt, %1, %14 : vector<1x128xi32>
    %cst_3 = arith.constant 0.000000e+00 : f32
    %16 = vector.shape_cast %15 : vector<1x128xi1> to vector<1x128xi1>
    %17 = vector.broadcast %16 : vector<1x128xi1> to vector<4x128xi1>
    %18 = vector.broadcast %cst_3 : f32 to vector<4x128xf32>
    %19 = arith.select %17, %13, %18 : vector<4x128xi1>, vector<4x128xf32>
    %20 = arith.addf %12, %19 : vector<4x128xf32>
    %c126_i32 = arith.constant 126 : i32
    %21 = tpu.dynamic_rotate %20 by %c126_i32 dim 1 : vector<4x128xf32>, i32 -> vector<4x128xf32>
    %c126_i32_4 = arith.constant 126 : i32
    %22 = vector.broadcast %c126_i32_4 : i32 to vector<1x128xi32>
    %23 = arith.cmpi slt, %1, %22 : vector<1x128xi32>
    %cst_5 = arith.constant 0.000000e+00 : f32
    %24 = vector.shape_cast %23 : vector<1x128xi1> to vector<1x128xi1>
    %25 = vector.broadcast %24 : vector<1x128xi1> to vector<4x128xi1>
    %26 = vector.broadcast %cst_5 : f32 to vector<4x128xf32>
    %27 = arith.select %25, %21, %26 : vector<4x128xi1>, vector<4x128xf32>
    %28 = arith.addf %20, %27 : vector<4x128xf32>
    %c124_i32 = arith.constant 124 : i32
    %29 = tpu.dynamic_rotate %28 by %c124_i32 dim 1 : vector<4x128xf32>, i32 -> vector<4x128xf32>
    %c124_i32_6 = arith.constant 124 : i32
    %30 = vector.broadcast %c124_i32_6 : i32 to vector<1x128xi32>
    %31 = arith.cmpi slt, %1, %30 : vector<1x128xi32>
    %cst_7 = arith.constant 0.000000e+00 : f32
    %32 = vector.shape_cast %31 : vector<1x128xi1> to vector<1x128xi1>
    %33 = vector.broadcast %32 : vector<1x128xi1> to vector<4x128xi1>
    %34 = vector.broadcast %cst_7 : f32 to vector<4x128xf32>
    %35 = arith.select %33, %29, %34 : vector<4x128xi1>, vector<4x128xf32>
    %36 = arith.addf %28, %35 : vector<4x128xf32>
    %c120_i32 = arith.constant 120 : i32
    %37 = tpu.dynamic_rotate %36 by %c120_i32 dim 1 : vector<4x128xf32>, i32 -> vector<4x128xf32>
    %c120_i32_8 = arith.constant 120 : i32
    %38 = vector.broadcast %c120_i32_8 : i32 to vector<1x128xi32>
    %39 = arith.cmpi slt, %1, %38 : vector<1x128xi32>
    %cst_9 = arith.constant 0.000000e+00 : f32
    %40 = vector.shape_cast %39 : vector<1x128xi1> to vector<1x128xi1>
    %41 = vector.broadcast %40 : vector<1x128xi1> to vector<4x128xi1>
    %42 = vector.broadcast %cst_9 : f32 to vector<4x128xf32>
    %43 = arith.select %41, %37, %42 : vector<4x128xi1>, vector<4x128xf32>
    %44 = arith.addf %36, %43 : vector<4x128xf32>
    %c112_i32 = arith.constant 112 : i32
    %45 = tpu.dynamic_rotate %44 by %c112_i32 dim 1 : vector<4x128xf32>, i32 -> vector<4x128xf32>
    %c112_i32_10 = arith.constant 112 : i32
    %46 = vector.broadcast %c112_i32_10 : i32 to vector<1x128xi32>
    %47 = arith.cmpi slt, %1, %46 : vector<1x128xi32>
    %cst_11 = arith.constant 0.000000e+00 : f32
    %48 = vector.shape_cast %47 : vector<1x128xi1> to vector<1x128xi1>
    %49 = vector.broadcast %48 : vector<1x128xi1> to vector<4x128xi1>
    %50 = vector.broadcast %cst_11 : f32 to vector<4x128xf32>
    %51 = arith.select %49, %45, %50 : vector<4x128xi1>, vector<4x128xf32>
    %52 = arith.addf %44, %51 : vector<4x128xf32>
    %c96_i32 = arith.constant 96 : i32
    %53 = tpu.dynamic_rotate %52 by %c96_i32 dim 1 : vector<4x128xf32>, i32 -> vector<4x128xf32>
    %c96_i32_12 = arith.constant 96 : i32
    %54 = vector.broadcast %c96_i32_12 : i32 to vector<1x128xi32>
    %55 = arith.cmpi slt, %1, %54 : vector<1x128xi32>
    %cst_13 = arith.constant 0.000000e+00 : f32
    %56 = vector.shape_cast %55 : vector<1x128xi1> to vector<1x128xi1>
    %57 = vector.broadcast %56 : vector<1x128xi1> to vector<4x128xi1>
    %58 = vector.broadcast %cst_13 : f32 to vector<4x128xf32>
    %59 = arith.select %57, %53, %58 : vector<4x128xi1>, vector<4x128xf32>
    %60 = arith.addf %52, %59 : vector<4x128xf32>
    %c64_i32 = arith.constant 64 : i32
    %61 = tpu.dynamic_rotate %60 by %c64_i32 dim 1 : vector<4x128xf32>, i32 -> vector<4x128xf32>
    %c64_i32_14 = arith.constant 64 : i32
    %62 = vector.broadcast %c64_i32_14 : i32 to vector<1x128xi32>
    %63 = arith.cmpi slt, %1, %62 : vector<1x128xi32>
    %cst_15 = arith.constant 0.000000e+00 : f32
    %64 = vector.shape_cast %63 : vector<1x128xi1> to vector<1x128xi1>
    %65 = vector.broadcast %64 : vector<1x128xi1> to vector<4x128xi1>
    %66 = vector.broadcast %cst_15 : f32 to vector<4x128xf32>
    %67 = arith.select %65, %61, %66 : vector<4x128xi1>, vector<4x128xf32>
    %68 = arith.addf %60, %67 : vector<4x128xf32>
    %cst_16 = arith.constant 1.000000e-10 : f32
    %69 = vector.broadcast %cst_16 : f32 to vector<4x128xf32>
    %70 = arith.addf %68, %69 : vector<4x128xf32>
    %71 = math.log %70 : vector<4x128xf32>
    %72 = vector.broadcast %3 : vector<4x1xf32> to vector<4x128xf32>
    %73 = arith.subf %0, %72 : vector<4x128xf32>
    %74 = arith.subf %71, %73 : vector<4x128xf32>
    %c8_i32_17 = arith.constant 8 : i32
    %75 = vector.broadcast %c8_i32_17 : i32 to vector<1x128xi32>
    %76 = arith.cmpi slt, %1, %75 : vector<1x128xi32>
    %cst_18 = arith.constant 0.000000e+00 : f32
    %77 = vector.shape_cast %76 : vector<1x128xi1> to vector<1x128xi1>
    %78 = vector.broadcast %77 : vector<1x128xi1> to vector<4x128xi1>
    %79 = vector.broadcast %cst_18 : f32 to vector<4x128xf32>
    %80 = arith.select %78, %74, %79 : vector<4x128xi1>, vector<4x128xf32>
    %cst_19 = arith.constant dense<0.000000e+00> : vector<128xf32>
    %81 = vector.multi_reduction <add>, %80, %cst_19 [0] : vector<4x128xf32> to vector<128xf32>
    %82 = vector.shape_cast %81 : vector<128xf32> to vector<1x128xf32>
    %c0_20 = arith.constant 0 : index
    %c0_21 = arith.constant 0 : index
    %c0_22 = arith.constant 0 : index
    %83 = vector.load %arg2[%c0_20, %c0_21, %c0_22] : memref<1x1x128xf32, #tpu.memory_space<vmem>>, vector<1x1x128xf32>
    %84 = vector.shape_cast %83 : vector<1x1x128xf32> to vector<1x128xf32>
    %85 = vector.shape_cast %82 : vector<1x128xf32> to vector<1x1x128xf32>
    tpu.vector_store %arg2[%c0_20, %c0_21, %c0_22], %85 {strides = array<i32>} : memref<1x1x128xf32, #tpu.memory_space<vmem>>, vector<1x1x128xf32>,
    return
  }
  func.func @transform_0(%arg0: i32) -> (i32, i32) {
    %c0_i32 = arith.constant 0 : i32
    %c0_i32_0 = arith.constant 0 : i32
    return %arg0, %c0_i32 : i32, i32
  }
  func.func @transform_1(%arg0: i32) -> (i32, i32, i32) {
    %c0_i32 = arith.constant 0 : i32
    %c0_i32_0 = arith.constant 0 : i32
    %c0_i32_1 = arith.constant 0 : i32
    return %arg0, %c0_i32, %c0_i32_0 : i32, i32, i32
  }
}

</mosaic_0001>

<llo_original>
// kernel: tpu_custom_call.1
$region0: #{tpu_custom_call.1}
  #allocation0 [shape = 'u32[]', space=smem, size = 0x4, offset = 0x4, fixed_abs, tag = 'smem constant byte address 0x4 - core index']
  #allocation1 [shape = 'u32[144,128]{1,0:T(1,128)}', space=vmem, size = 0x12000, scoped, tag = 'internal scratch']
  %s0 = inlined_call_operand.hbm [shape: f32[4,128], index: 0, kind: input, shape index: {}]
  %s1 = inlined_call_operand.hbm [shape: f32[1,1,128], index: 1, kind: output, shape index: {}]
  %s2 = sld [smem:[#allocation0]]
  $region18: #{tpu_custom_call.1} parent=0
    _
  %s4 = ssub.s32 1, %s2
  %s5 = scalar_select 0, %s4, %s2
  $region1: #{tpu_custom_call.1} parent=0
    #allocation2 [shape = 'u8[2048]{0}', space=vmem, size = 0x800, scoped, tag = 'input window, operand 0, single buffered']
    #allocation3 [shape = 's32[1]{0}', space=sflag, size = 0x4, scoped, tag = 'scoped memory for tpu_custom_call.1']
    #allocation4 [shape = 's32[1]{0}', space=sflag, size = 0x4, scoped, tag = 'scoped memory for tpu_custom_call.1']
    #allocation5 [shape = 'u8[512]{0}', space=vmem, size = 0x400, scoped, tag = 'output window, operand 0, single buffered']
    %6 = vsyncpa [#allocation3], 0
    %7 = vsyncpa [#allocation4], 0
    // Predicated region
    $region2: #{tpu_custom_call.1} parent=1 // pred_check
      _
    $region3: #{tpu_custom_call.1} parent=1 // pred_check_branch
      %9 = sbr.rel (0) target = $region5
    $region4: #{tpu_custom_call.1} parent=1 // pred_region
      %s11 = ssub.s32 64, 64
      %12 = vsyncadd [#allocation3], %s11
      %s14 = sshll.u32 [#allocation2], 4
      %s15 = int_to_ptr.vmem [resolvable:$true] %s14
      %17 = dma.hbm_to_vmem [thread:$0]  %s0, 64, %s15, [#allocation3]
    $region5: #{tpu_custom_call.1} parent=1 // pred_fallthru
      _
    // Predicated region
    $region6: #{tpu_custom_call.1} parent=1 // pred_check
      _
    $region7: #{tpu_custom_call.1} parent=1 // pred_check_branch
      %19 = sbr.rel (0) target = $region9
    $region8: #{tpu_custom_call.1} parent=1 // pred_region
      %20 = dma.done [#allocation3], 64
    $region9: #{tpu_custom_call.1} parent=1 // pred_fallthru
      _
    %v21 = vld [vmem:[#allocation2] sm:$0xf]
    %v22 = vlaneseq
    %v23 = vand.u32 %v22, 127
    %vm24 = vcmask 1043456
    %v25 = vsel %vm24, %v21, -inf
    %26 = vmax.xlane.f32.xlu0 %v25
    %v27 = vpop.xlane.xlu0 %26
    %v28 = vsub.f32 %v21, %v27
    %v29 = vmul.f32 %v28, 1.442695
    %v30 = vpow.pop %v29
    %vm31 = vcmp.lt.s32.totalorder %v23, 8
    %v32 = vsel %vm31, 1, 0
    %vm33 = vcmp.eq.s32.totalorder %v32, 1
    %v34 = vsel %vm33, %v30, 0.0
    %35 = vrot.lane.b32.xlu0 %v34, 127
    %v36 = vpop.permute.xlu0 %35
    %vm37 = vcmp.lt.s32.totalorder %v23, 127
    %v38 = vsel %vm37, 1, 0
    %vm39 = vcmp.eq.s32.totalorder %v38, 1
    %v40 = vsel %vm39, %v36, 0.0
    %v41 = vadd.f32 %v34, %v40
    %42 = vrot.lane.b32.xlu0 %v41, 126
    %v43 = vpop.permute.xlu0 %42
    %vm44 = vcmp.lt.s32.totalorder %v23, 126
    %v45 = vsel %vm44, 1, 0
    %vm46 = vcmp.eq.s32.totalorder %v45, 1
    %v47 = vsel %vm46, %v43, 0.0
    %v48 = vadd.f32 %v41, %v47
    %49 = vrot.lane.b32.xlu0 %v48, 124
    %v50 = vpop.permute.xlu0 %49
    %vm51 = vcmp.lt.s32.totalorder %v23, 124
    %v52 = vsel %vm51, 1, 0
    %vm53 = vcmp.eq.s32.totalorder %v52, 1
    %v54 = vsel %vm53, %v50, 0.0
    %v55 = vadd.f32 %v48, %v54
    %56 = vrot.lane.b32.xlu0 %v55, 120
    %v57 = vpop.permute.xlu0 %56
    %vm58 = vcmp.lt.s32.totalorder %v23, 120
    %v59 = vsel %vm58, 1, 0
    %vm60 = vcmp.eq.s32.totalorder %v59, 1
    %v61 = vsel %vm60, %v57, 0.0
    %v62 = vadd.f32 %v55, %v61
    %63 = vrot.lane.b32.xlu0 %v62, 112
    %v64 = vpop.permute.xlu0 %63
    %vm65 = vcmp.lt.s32.totalorder %v23, 112
    %v66 = vsel %vm65, 1, 0
    %vm67 = vcmp.eq.s32.totalorder %v66, 1
    %v68 = vsel %vm67, %v64, 0.0
    %v69 = vadd.f32 %v62, %v68
    %70 = vrot.lane.b32.xlu0 %v69, 96
    %v71 = vpop.permute.xlu0 %70
    %vm72 = vcmp.lt.s32.totalorder %v23, 96
    %v73 = vsel %vm72, 1, 0
    %vm74 = vcmp.eq.s32.totalorder %v73, 1
    %v75 = vsel %vm74, %v71, 0.0
    %v76 = vadd.f32 %v69, %v75
    %77 = vrot.lane.b32.xlu0 %v76, 64
    %v78 = vpop.permute.xlu0 %77
    %vm79 = vcmp.lt.s32.totalorder %v23, 64
    %v80 = vsel %vm79, 1, 0
    %vm81 = vcmp.eq.s32.totalorder %v80, 1
    %v82 = vsel %vm81, %v78, 0.0
    %v83 = vadd.f32 %v76, %v82
    %v84 = vadd.f32 %v83, 1e-10
    %v85 = vlog2.pop %v84
    %v86 = vmul.f32 %v85, 0.6931472
    %v87 = vsub.f32 %v86, %v28
    %v88 = vsel %vm33, %v87, 0.0
    %v89 = vsel %vm24, %v88, 0.0
    %v90 = vrot.slane %v89, 4
    %v91 = vadd.f32 %v89, %v90
    %v92 = vrot.slane %v91, 2
    %v93 = vadd.f32 %v91, %v92
    %v94 = vrot.slane %v93, 1
    %v95 = vadd.f32 %v93, %v94
    %96 = vst [vmem:[#allocation5] sm:$0x1] %v95
    // Predicated region
    $region10: #{tpu_custom_call.1} parent=1 // pred_check
      _
    $region11: #{tpu_custom_call.1} parent=1 // pred_check_branch
      %98 = sbr.rel (0) target = $region13
    $region12: #{tpu_custom_call.1} parent=1 // pred_region
      %s100 = ssub.s32 16, 16
      %101 = vsyncadd [#allocation4], %s100
      %s103 = sshll.u32 [#allocation5], 4
      %s104 = int_to_ptr.vmem [resolvable:$true] %s103
      %106 = dma.vmem_to_hbm [thread:$0]  %s104, 16, %s1, [#allocation4]
    $region13: #{tpu_custom_call.1} parent=1 // pred_fallthru
      _
    // Predicated region
    $region14: #{tpu_custom_call.1} parent=1 // pred_check
      _
    $region15: #{tpu_custom_call.1} parent=1 // pred_check_branch
      %108 = sbr.rel (0) target = $region17
    $region16: #{tpu_custom_call.1} parent=1 // pred_region
      %109 = dma.done [#allocation4], 16
    $region17: #{tpu_custom_call.1} parent=1 // pred_fallthru
      _
    %110 = vsyncpa [#allocation3], 1
    %111 = vsyncpa [#allocation4], 1

</llo_original>
